<compile_context>
chip_gen: v7x
topology: tpu7x:2x2x1
jax: 0.10.0
libtpu: 0.0.40
codegen_flags: <defaults>
</compile_context>

<pallas_src>
import numpy as np
import jax
import jax.numpy as jnp
from jax.experimental import pallas as pl
from jax.experimental.pallas import tpu as pltpu


def _sobel_kernel_3d(x_ref, o_ref):
    """Block (P, H, W): whole planes, lane axis = W (used when W >= 128)."""
    x = x_ref[...]
    _, H, W = x.shape
    f = x.dtype

    # Tiny boundary masks; broadcast-multiplied against full tiles.
    row = jax.lax.broadcasted_iota(jnp.int32, (1, H, 1), 1)
    col = jax.lax.broadcasted_iota(jnp.int32, (1, 1, W), 2)
    not_top = (row != 0).astype(f)
    not_bot = (row != H - 1).astype(f)
    not_lft = (col != 0).astype(f)
    not_rgt = (col != W - 1).astype(f)

    up = pltpu.roll(x, 1 % H, axis=1) * not_top          # x[y-1, w] (0 at y=0)
    dn = pltpu.roll(x, (H - 1) % H, axis=1) * not_bot    # x[y+1, w] (0 at y=H-1)
    v = up + (x + x) + dn                                # vertical 1-2-1 smooth
    dy = up - dn                                         # vertical difference

    v_r = pltpu.roll(v, (W - 1) % W, axis=2) * not_rgt   # v[y, w+1]
    v_l = pltpu.roll(v, 1 % W, axis=2) * not_lft         # v[y, w-1]
    d_l = pltpu.roll(dy, 1 % W, axis=2) * not_lft        # dy[y, w-1]
    d_r = pltpu.roll(dy, (W - 1) % W, axis=2) * not_rgt  # dy[y, w+1]

    gx = v_r - v_l
    gy = d_l + (dy + dy) + d_r
    o_ref[...] = (jnp.abs(gx) + jnp.abs(gy)).astype(o_ref.dtype)


def _make_sobel_kernel_flat(H, W):
    """Block (P, H*W): planes flattened along lanes (used when W < 128)."""
    HW = H * W

    def kernel(x_ref, m_ref, o_ref):
        x = x_ref[...]                    # (P, H*W)
        m = m_ref[...]                    # (4, H*W) float edge masks, resident
        not_top, not_bot, not_lft, not_rgt = m[0:1], m[1:2], m[2:3], m[3:4]

        up = pltpu.roll(x, W % HW, axis=1) * not_top           # x[y-1, w]
        dn = pltpu.roll(x, (HW - W) % HW, axis=1) * not_bot    # x[y+1, w]
        v = up + (x + x) + dn                                  # vertical 1-2-1
        dy = up - dn                                           # vertical diff

        v_r = pltpu.roll(v, (HW - 1) % HW, axis=1) * not_rgt   # v[y, w+1]
        v_l = pltpu.roll(v, 1 % HW, axis=1) * not_lft          # v[y, w-1]
        d_l = pltpu.roll(dy, 1 % HW, axis=1) * not_lft         # dy[y, w-1]
        d_r = pltpu.roll(dy, (HW - 1) % HW, axis=1) * not_rgt  # dy[y, w+1]

        gx = v_r - v_l
        gy = d_l + (dy + dy) + d_r
        o_ref[...] = (jnp.abs(gx) + jnp.abs(gy)).astype(o_ref.dtype)

    return kernel


def _choose_planes_per_block(num_planes, plane_bytes, *, sublane_align,
                             target_bytes=2 << 20, min_steps=4):
    """Planes per grid block.

    ~target_bytes per input tile, >= min_steps grid steps when possible (v7x
    megacore balance), and -- for the flattened layout, where planes sit on the
    sublane axis -- a multiple of 8 (or the full extent) so tiles stay
    sublane-dense and the BlockSpec stays legal.  Ragged trailing blocks are
    fine: Pallas pads reads and masks writes.
    """
    if sublane_align and num_planes <= 8:
        return num_planes
    p = int(max(1, min(num_planes, target_bytes // max(plane_bytes, 1))))
    if num_planes // p < min_steps:
        p = max(1, num_planes // min_steps)
    if sublane_align:
        p = max(8, p - (p % 8))
    return max(1, min(p, num_planes))


def sobelxy(x, planes_per_block=None):
    """x: (b, c, H, W) float -> (b, c, 1, H, W), |sobel_x| + |sobel_y| per plane."""
    b, c, H, W = x.shape
    bc = b * c
    itemsize = jnp.dtype(x.dtype).itemsize

    compiler_params = pltpu.CompilerParams(
        dimension_semantics=("parallel",),
        vmem_limit_bytes=32 * 1024 * 1024)
    cost = pl.CostEstimate(flops=14 * bc * H * W, transcendentals=0,
                           bytes_accessed=2 * bc * H * W * itemsize)

    if W < 128:
        # Lane-dense flattened layout: pure reshape (planes are contiguous), so
        # no extra HBM traffic; rolls by +-1 and +-W do the 3x3 stencil.
        HW = H * W
        x_in = x.reshape(bc, HW)
        P = planes_per_block or _choose_planes_per_block(
            bc, HW * itemsize, sublane_align=True)
        grid = (pl.cdiv(bc, P),)

        yy, xx = np.divmod(np.arange(HW), W)
        edge = jnp.asarray(np.stack(
            [yy != 0, yy != H - 1, xx != 0, xx != W - 1]).astype(np.float32))

        out_flat = pl.pallas_call(
            _make_sobel_kernel_flat(H, W),
            out_shape=jax.ShapeDtypeStruct((bc, HW), x.dtype),
            grid_spec=pltpu.PrefetchScalarGridSpec(
                num_scalar_prefetch=0,
                grid=grid,
                in_specs=[pl.BlockSpec((P, HW), lambda i: (i, 0)),
                          pl.BlockSpec((4, HW), lambda i: (0, 0))],
                out_specs=pl.BlockSpec((P, HW), lambda i: (i, 0)),
            ),
            compiler_params=compiler_params,
            cost_estimate=cost,
        )(x_in, edge)
    else:
        # Already lane-dense: whole (H, W) planes per block.
        x_in = x.reshape(bc, H, W)
        P = planes_per_block or _choose_planes_per_block(
            bc, H * W * itemsize, sublane_align=False)
        grid = (pl.cdiv(bc, P),)

        out_flat = pl.pallas_call(
            _sobel_kernel_3d,
            out_shape=jax.ShapeDtypeStruct((bc, H, W), x.dtype),
            grid_spec=pltpu.PrefetchScalarGridSpec(
                num_scalar_prefetch=0,
                grid=grid,
                in_specs=[pl.BlockSpec((P, H, W), lambda i: (i, 0, 0))],
                out_specs=pl.BlockSpec((P, H, W), lambda i: (i, 0, 0)),
            ),
            compiler_params=compiler_params,
            cost_estimate=cost,
        )(x_in)

    return out_flat.reshape(b, c, 1, H, W)


def _sobelxy_ref(x):
    """Pure-JAX reference (lax conv, zero padding) for correctness check."""
    b, c, H, W = x.shape
    kx = jnp.array([[-1., 0., 1.], [-2., 0., 2.], [-1., 0., 1.]], jnp.float32)
    ky = jnp.array([[1., 2., 1.], [0., 0., 0.], [-1., -2., -1.]], jnp.float32)
    xi = x.reshape(b * c, 1, H, W).astype(jnp.float32)
    conv = lambda k: jax.lax.conv_general_dilated(
        xi, k.reshape(1, 1, 3, 3), window_strides=(1, 1),
        padding=((1, 1), (1, 1)), dimension_numbers=("NCHW", "OIHW", "NCHW"))
    out = jnp.abs(conv(kx)) + jnp.abs(conv(ky))
    return out.reshape(b, c, 1, H, W).astype(x.dtype)


if __name__ == "__main__":
    key0, key1 = jax.random.split(jax.random.PRNGKey(0))

    # Narrow-image shape -> flattened lane-dense path (the module's test shape).
    x1 = jax.random.normal(key0, (2, 4, 16, 16), dtype=jnp.float32)
    out1 = jax.block_until_ready(sobelxy(x1))
    assert out1.shape == (2, 4, 1, 16, 16), out1.shape
    assert jnp.allclose(out1, _sobelxy_ref(x1), atol=1e-5, rtol=1e-5), "flat path mismatch"

    # Wide-image shape -> 3-D (already lane-dense) path.
    x2 = jax.random.normal(key1, (1, 3, 20, 128), dtype=jnp.float32)
    out2 = jax.block_until_ready(sobelxy(x2))
    assert out2.shape == (1, 3, 1, 20, 128), out2.shape
    assert jnp.allclose(out2, _sobelxy_ref(x2), atol=1e-5, rtol=1e-5), "3d path mismatch"

    print("KERNEL_OK")
</pallas_src>

<mosaic_0001>
module attributes {stable_mosaic.version = 11 : i64} {
  func.func @kernel(%arg0: i32, %arg1: memref<8x256xf32, #tpu.memory_space<vmem>>, %arg2: memref<4x256xf32, #tpu.memory_space<vmem>>, %arg3: memref<8x256xf32, #tpu.memory_space<vmem>>) attributes {dimension_semantics = [#tpu.dimension_semantics<parallel>], iteration_bounds = array<i64: 1>, scalar_prefetch = 0 : i64, scratch_operands = 0 : i64, tpu.core_type = #tpu.core_type<tc>, window_params = [{transform_indices = @transform_0, window_bounds = array<i64: 8, 256>}, {pipeline_mode = #tpu.pipeline_mode<synchronous>, transform_indices = @transform_1, window_bounds = array<i64: 4, 256>}, {transform_indices = @transform_2, window_bounds = array<i64: 8, 256>}]} {
    %c0 = arith.constant 0 : index
    %c0_0 = arith.constant 0 : index
    %0 = vector.load %arg1[%c0, %c0_0] : memref<8x256xf32, #tpu.memory_space<vmem>>, vector<8x256xf32>
    %c0_1 = arith.constant 0 : index
    %c0_2 = arith.constant 0 : index
    %1 = vector.load %arg2[%c0_1, %c0_2] : memref<4x256xf32, #tpu.memory_space<vmem>>, vector<4x256xf32>
    %2 = vector.extract_strided_slice %1 {offsets = [0, 0], sizes = [1, 256], strides = [1, 1]} : vector<4x256xf32> to vector<1x256xf32>
    %3 = vector.extract_strided_slice %1 {offsets = [1, 0], sizes = [1, 256], strides = [1, 1]} : vector<4x256xf32> to vector<1x256xf32>
    %4 = vector.extract_strided_slice %1 {offsets = [2, 0], sizes = [1, 256], strides = [1, 1]} : vector<4x256xf32> to vector<1x256xf32>
    %5 = vector.extract_strided_slice %1 {offsets = [3, 0], sizes = [1, 256], strides = [1, 1]} : vector<4x256xf32> to vector<1x256xf32>
    %c16_i32 = arith.constant 16 : i32
    %6 = tpu.dynamic_rotate %0 by %c16_i32 dim 1 : vector<8x256xf32>, i32 -> vector<8x256xf32>
    %7 = vector.broadcast %2 : vector<1x256xf32> to vector<8x256xf32>
    %8 = arith.mulf %6, %7 : vector<8x256xf32>
    %c240_i32 = arith.constant 240 : i32
    %9 = tpu.dynamic_rotate %0 by %c240_i32 dim 1 : vector<8x256xf32>, i32 -> vector<8x256xf32>
    %10 = vector.broadcast %3 : vector<1x256xf32> to vector<8x256xf32>
    %11 = arith.mulf %9, %10 : vector<8x256xf32>
    %12 = arith.addf %0, %0 : vector<8x256xf32>
    %13 = arith.addf %8, %12 : vector<8x256xf32>
    %14 = arith.addf %13, %11 : vector<8x256xf32>
    %15 = arith.subf %8, %11 : vector<8x256xf32>
    %c255_i32 = arith.constant 255 : i32
    %16 = tpu.dynamic_rotate %14 by %c255_i32 dim 1 : vector<8x256xf32>, i32 -> vector<8x256xf32>
    %17 = vector.broadcast %5 : vector<1x256xf32> to vector<8x256xf32>
    %18 = arith.mulf %16, %17 : vector<8x256xf32>
    %c1_i32 = arith.constant 1 : i32
    %19 = tpu.dynamic_rotate %14 by %c1_i32 dim 1 : vector<8x256xf32>, i32 -> vector<8x256xf32>
    %20 = vector.broadcast %4 : vector<1x256xf32> to vector<8x256xf32>
    %21 = arith.mulf %19, %20 : vector<8x256xf32>
    %c1_i32_3 = arith.constant 1 : i32
    %22 = tpu.dynamic_rotate %15 by %c1_i32_3 dim 1 : vector<8x256xf32>, i32 -> vector<8x256xf32>
    %23 = vector.broadcast %4 : vector<1x256xf32> to vector<8x256xf32>
    %24 = arith.mulf %22, %23 : vector<8x256xf32>
    %c255_i32_4 = arith.constant 255 : i32
    %25 = tpu.dynamic_rotate %15 by %c255_i32_4 dim 1 : vector<8x256xf32>, i32 -> vector<8x256xf32>
    %26 = vector.broadcast %5 : vector<1x256xf32> to vector<8x256xf32>
    %27 = arith.mulf %25, %26 : vector<8x256xf32>
    %28 = arith.subf %18, %21 : vector<8x256xf32>
    %29 = arith.addf %15, %15 : vector<8x256xf32>
    %30 = arith.addf %24, %29 : vector<8x256xf32>
    %31 = arith.addf %30, %27 : vector<8x256xf32>
    %32 = math.absf %28 : vector<8x256xf32>
    %33 = math.absf %31 : vector<8x256xf32>
    %34 = arith.addf %32, %33 : vector<8x256xf32>
    %c0_5 = arith.constant 0 : index
    %c0_6 = arith.constant 0 : index
    %35 = vector.load %arg3[%c0_5, %c0_6] : memref<8x256xf32, #tpu.memory_space<vmem>>, vector<8x256xf32>
    tpu.vector_store %arg3[%c0_5, %c0_6], %34 {strides = array<i32>} : memref<8x256xf32, #tpu.memory_space<vmem>>, vector<8x256xf32>,
    return
  }
  func.func @transform_0(%arg0: i32) -> (i32, i32) {
    %c0_i32 = arith.constant 0 : i32
    %c0_i32_0 = arith.constant 0 : i32
    return %arg0, %c0_i32 : i32, i32
  }
  func.func @transform_1(%arg0: i32) -> (i32, i32) {
    %c0_i32 = arith.constant 0 : i32
    %c0_i32_0 = arith.constant 0 : i32
    %c0_i32_1 = arith.constant 0 : i32
    return %c0_i32, %c0_i32_0 : i32, i32
  }
  func.func @transform_2(%arg0: i32) -> (i32, i32) {
    %c0_i32 = arith.constant 0 : i32
    %c0_i32_0 = arith.constant 0 : i32
    return %arg0, %c0_i32 : i32, i32
  }
}

</mosaic_0001>

<llo_original>
// kernel: tpu_custom_call.1
$region0: #{tpu_custom_call.1}
  #allocation0 [shape = 'u32[]', space=smem, size = 0x4, offset = 0x4, fixed_abs, tag = 'smem constant byte address 0x4 - core index']
  #allocation1 [shape = 'u32[144,128]{1,0:T(1,128)}', space=vmem, size = 0x12000, scoped, tag = 'internal scratch']
  %s0 = inlined_call_operand.hbm [shape: f32[8,256], index: 0, kind: input, shape index: {}]
  %s1 = inlined_call_operand.hbm [shape: f32[4,256], index: 1, kind: input, shape index: {}]
  %s2 = inlined_call_operand.hbm [shape: f32[8,256], index: 2, kind: output, shape index: {}]
  %s3 = sld [smem:[#allocation0]]
  $region26: #{tpu_custom_call.1} parent=0
    _
  %s5 = ssub.s32 1, %s3
  %s6 = scalar_select 0, %s5, %s3
  $region1: #{tpu_custom_call.1} parent=0
    #allocation2 [shape = 'u8[8192]{0}', space=vmem, size = 0x2000, scoped, tag = 'input window, operand 0, single buffered']
    #allocation3 [shape = 's32[1]{0}', space=sflag, size = 0x4, scoped, tag = 'scoped memory for tpu_custom_call.1']
    #allocation4 [shape = 's32[1]{0}', space=sflag, size = 0x4, scoped, tag = 'scoped memory for tpu_custom_call.1']
    #allocation5 [shape = 'u8[4096]{0}', space=vmem, size = 0x1000, scoped, tag = 'input window, operand 1, single buffered']
    #allocation6 [shape = 's32[1]{0}', space=sflag, size = 0x4, scoped, tag = 'scoped memory for tpu_custom_call.1']
    #allocation7 [shape = 'u8[8192]{0}', space=vmem, size = 0x2000, scoped, tag = 'output window, operand 0, single buffered']
    %7 = vsyncpa [#allocation3], 0
    %8 = vsyncpa [#allocation6], 0
    %9 = vsyncpa [#allocation4], 0
    // Predicated region
    $region2: #{tpu_custom_call.1} parent=1 // pred_check
      _
    $region3: #{tpu_custom_call.1} parent=1 // pred_check_branch
      %11 = sbr.rel (0) target = $region5
    $region4: #{tpu_custom_call.1} parent=1 // pred_region
      %s13 = ssub.s32 256, 256
      %14 = vsyncadd [#allocation3], %s13
      %s16 = sshll.u32 [#allocation2], 4
      %s17 = int_to_ptr.vmem [resolvable:$true] %s16
      %19 = dma.hbm_to_vmem [thread:$0]  %s0, 256, %s17, [#allocation3]
    $region5: #{tpu_custom_call.1} parent=1 // pred_fallthru
      _
    // Predicated region
    $region6: #{tpu_custom_call.1} parent=1 // pred_check
      _
    $region7: #{tpu_custom_call.1} parent=1 // pred_check_branch
      %21 = sbr.rel (0) target = $region9
    $region8: #{tpu_custom_call.1} parent=1 // pred_region
      %s23 = ssub.s32 128, 128
      %24 = vsyncadd [#allocation6], %s23
      %s26 = sshll.u32 [#allocation5], 4
      %s27 = int_to_ptr.vmem [resolvable:$true] %s26
      %29 = dma.hbm_to_vmem [thread:$0]  %s1, 128, %s27, [#allocation6]
    $region9: #{tpu_custom_call.1} parent=1 // pred_fallthru
      _
    // Predicated region
    $region10: #{tpu_custom_call.1} parent=1 // pred_check
      _
    $region11: #{tpu_custom_call.1} parent=1 // pred_check_branch
      %31 = sbr.rel (0) target = $region13
    $region12: #{tpu_custom_call.1} parent=1 // pred_region
      %32 = dma.done [#allocation3], 256
    $region13: #{tpu_custom_call.1} parent=1 // pred_fallthru
      _
    // Predicated region
    $region14: #{tpu_custom_call.1} parent=1 // pred_check
      _
    $region15: #{tpu_custom_call.1} parent=1 // pred_check_branch
      %34 = sbr.rel (0) target = $region17
    $region16: #{tpu_custom_call.1} parent=1 // pred_region
      %35 = dma.done [#allocation6], 128
    $region17: #{tpu_custom_call.1} parent=1 // pred_fallthru
      _
    %v36 = vld [vmem:[#allocation2] sm:$0xff]
    %v37 = vld [vmem:[#allocation2 + $0x8] sm:$0xff]
    %v38 = vld [vmem:[#allocation5] sm:$0xff]
    %39 = vrot.lane.b32.xlu0 %v36, 16
    %v40 = vpop.permute.xlu0 %39
    %41 = vrot.lane.b32.xlu0 %v37, 16
    %v42 = vpop.permute.xlu0 %41
    %v43 = vlaneseq
    %v44 = vand.u32 %v43, 127
    %vm45 = vcmp.lt.s32.totalorder %v44, 16
    %v46 = vsel %vm45, %v40, %v42
    %v47 = vsel %vm45, %v42, %v40
    %v49 = vlaneseq
    %v50 = vshrl.u32 %v49, 7
    %v51 = vsub.s32 0, %v50
    %v52 = vrot.slane %v38, %v51
    %v53 = vlaneseq
    %v54 = vshrl.u32 %v53, 7
    %v55 = vsub.s32 4, %v54
    %v56 = vrot.slane %v38, %v55
    %v59 = vlaneseq
    %v60 = vshrl.u32 %v59, 7
    %v61 = vsub.s32 0, %v60
    %v62 = vrot.slane %v52, %v61
    %v63 = vlaneseq
    %v64 = vshrl.u32 %v63, 7
    %v65 = vsub.s32 0, %v64
    %v66 = vrot.slane %v56, %v65
    %v67 = vmul.f32 %v47, %v62
    %v68 = vmul.f32 %v46, %v66
    %69 = vrot.lane.b32.xlu0 %v36, 112
    %v70 = vpop.permute.xlu0 %69
    %71 = vrot.lane.b32.xlu0 %v37, 112
    %v72 = vpop.permute.xlu0 %71
    %vm73 = vcmp.lt.s32.totalorder %v44, 112
    %v74 = vsel %vm73, %v70, %v72
    %v75 = vsel %vm73, %v72, %v70
    %v76 = vlaneseq
    %v77 = vshrl.u32 %v76, 7
    %v78 = vsub.s32 1, %v77
    %v79 = vrot.slane %v38, %v78
    %v80 = vlaneseq
    %v81 = vshrl.u32 %v80, 7
    %v82 = vsub.s32 5, %v81
    %v83 = vrot.slane %v38, %v82
    %v86 = vlaneseq
    %v87 = vshrl.u32 %v86, 7
    %v88 = vsub.s32 1, %v87
    %v89 = vrot.slane %v79, %v88
    %v90 = vlaneseq
    %v91 = vshrl.u32 %v90, 7
    %v92 = vsub.s32 1, %v91
    %v93 = vrot.slane %v83, %v92
    %v94 = vmul.f32 %v74, %v89
    %v95 = vmul.f32 %v75, %v93
    %v96 = vadd.f32 %v36, %v36
    %v97 = vadd.f32 %v37, %v37
    %v98 = vadd.f32 %v67, %v96
    %v99 = vadd.f32 %v68, %v97
    %v100 = vadd.f32 %v98, %v94
    %v101 = vadd.f32 %v99, %v95
    %v102 = vsub.f32 %v67, %v94
    %v103 = vsub.f32 %v68, %v95
    %104 = vrot.lane.b32.xlu0 %v100, 127
    %v105 = vpop.permute.xlu0 %104
    %106 = vrot.lane.b32.xlu0 %v101, 127
    %v107 = vpop.permute.xlu0 %106
    %vm108 = vcmp.lt.s32.totalorder %v44, 127
    %v109 = vsel %vm108, %v105, %v107
    %v110 = vsel %vm108, %v107, %v105
    %v111 = vlaneseq
    %v112 = vshrl.u32 %v111, 7
    %v113 = vsub.s32 3, %v112
    %v114 = vrot.slane %v38, %v113
    %v115 = vlaneseq
    %v116 = vshrl.u32 %v115, 7
    %v117 = vsub.s32 7, %v116
    %v118 = vrot.slane %v38, %v117
    %v121 = vlaneseq
    %v122 = vshrl.u32 %v121, 7
    %v123 = vsub.s32 3, %v122
    %v124 = vrot.slane %v114, %v123
    %v125 = vlaneseq
    %v126 = vshrl.u32 %v125, 7
    %v127 = vsub.s32 3, %v126
    %v128 = vrot.slane %v118, %v127
    %v129 = vmul.f32 %v109, %v124
    %v130 = vmul.f32 %v110, %v128
    %131 = vrot.lane.b32.xlu0 %v100, 1
    %v132 = vpop.permute.xlu0 %131
    %133 = vrot.lane.b32.xlu0 %v101, 1
    %v134 = vpop.permute.xlu0 %133
    %vm135 = vcmp.lt.s32.totalorder %v44, 1
    %v136 = vsel %vm135, %v132, %v134
    %v137 = vsel %vm135, %v134, %v132
    %v138 = vlaneseq
    %v139 = vshrl.u32 %v138, 7
    %v140 = vsub.s32 2, %v139
    %v141 = vrot.slane %v38, %v140
    %v142 = vlaneseq
    %v143 = vshrl.u32 %v142, 7
    %v144 = vsub.s32 6, %v143
    %v145 = vrot.slane %v38, %v144
    %v148 = vlaneseq
    %v149 = vshrl.u32 %v148, 7
    %v150 = vsub.s32 2, %v149
    %v151 = vrot.slane %v141, %v150
    %v152 = vlaneseq
    %v153 = vshrl.u32 %v152, 7
    %v154 = vsub.s32 2, %v153
    %v155 = vrot.slane %v145, %v154
    %v156 = vmul.f32 %v137, %v151
    %v157 = vmul.f32 %v136, %v155
    %158 = vrot.lane.b32.xlu0 %v102, 1
    %v159 = vpop.permute.xlu0 %158
    %160 = vrot.lane.b32.xlu0 %v103, 1
    %v161 = vpop.permute.xlu0 %160
    %v162 = vsel %vm135, %v159, %v161
    %v163 = vsel %vm135, %v161, %v159
    %v164 = vmul.f32 %v163, %v151
    %v165 = vmul.f32 %v162, %v155
    %166 = vrot.lane.b32.xlu0 %v102, 127
    %v167 = vpop.permute.xlu0 %166
    %168 = vrot.lane.b32.xlu0 %v103, 127
    %v169 = vpop.permute.xlu0 %168
    %v170 = vsel %vm108, %v167, %v169
    %v171 = vsel %vm108, %v169, %v167
    %v172 = vmul.f32 %v170, %v124
    %v173 = vmul.f32 %v171, %v128
    %v174 = vsub.f32 %v129, %v156
    %v175 = vsub.f32 %v130, %v157
    %v176 = vadd.f32 %v102, %v102
    %v177 = vadd.f32 %v103, %v103
    %v178 = vadd.f32 %v164, %v176
    %v179 = vadd.f32 %v165, %v177
    %v180 = vadd.f32 %v178, %v172
    %v181 = vadd.f32 %v179, %v173
    %v182 = vand.u32 2147483647, %v174
    %v183 = vand.u32 2147483647, %v175
    %v184 = vand.u32 2147483647, %v180
    %v185 = vand.u32 2147483647, %v181
    %v186 = vadd.f32 %v182, %v184
    %v187 = vadd.f32 %v183, %v185
    %188 = vst [vmem:[#allocation7] sm:$0xff] %v186
    %189 = vst [vmem:[#allocation7 + $0x8] sm:$0xff] %v187
    // Predicated region
    $region18: #{tpu_custom_call.1} parent=1 // pred_check
      _
    $region19: #{tpu_custom_call.1} parent=1 // pred_check_branch
      %191 = sbr.rel (0) target = $region21
    $region20: #{tpu_custom_call.1} parent=1 // pred_region
      %s193 = ssub.s32 256, 256
      %194 = vsyncadd [#allocation4], %s193
      %s196 = sshll.u32 [#allocation7], 4
      %s197 = int_to_ptr.vmem [resolvable:$true] %s196
      %199 = dma.vmem_to_hbm [thread:$0]  %s197, 256, %s2, [#allocation4]
    $region21: #{tpu_custom_call.1} parent=1 // pred_fallthru
      _
    // Predicated region
    $region22: #{tpu_custom_call.1} parent=1 // pred_check
      _
    $region23: #{tpu_custom_call.1} parent=1 // pred_check_branch
      %201 = sbr.rel (0) target = $region25
    $region24: #{tpu_custom_call.1} parent=1 // pred_region
      %202 = dma.done [#allocation4], 256
    $region25: #{tpu_custom_call.1} parent=1 // pred_fallthru
      _
    %203 = vsyncpa [#allocation3], 1
    %204 = vsyncpa [#allocation6], 1
    %205 = vsyncpa [#allocation4], 1

</llo_original>
